<compile_context>
chip_gen: v7x
topology: tpu7x:2x2x1
jax: 0.10.0
libtpu: 0.0.40
codegen_flags: <defaults>
</compile_context>

<pallas_src>
import functools

import jax
import jax.numpy as jnp
from jax.experimental import pallas as pl
from jax.experimental.pallas import tpu as pltpu

_LANE = 128
_SUBLANE = 8


# ----------------------------------------------------------------------------- kernels
def _adexlif_step_kernel(x_ref, v_ref, w_ref, lin_ref,
                         spk_ref, v_out_ref, w_out_ref, *,
                         dt_over_taum, dt_over_tauw, inv_delta_T,
                         Vr, Vth, Vreset, Vrh, delta_T, a, b, R):
    x = x_ref[...]
    V = v_ref[...]
    W = w_ref[...]
    lin = lin_ref[...]                                      # (1, tile_c): broadcasts over rows

    I = lin * x
    v_minus_vr = V - Vr
    exp_term = delta_T * jnp.exp((V - Vrh) * inv_delta_T)   # EUP transcendental
    V_new = V + dt_over_taum * (exp_term - v_minus_vr + R * (I - W))
    W_new = W + dt_over_tauw * (a * v_minus_vr - W)

    spike = V_new - Vth >= 0.0                              # SurrGradSpike forward = Heaviside
    spk_ref[...] = jnp.where(spike, 1.0, 0.0).astype(spk_ref.dtype)
    w_out_ref[...] = jnp.where(spike, W_new + b, W_new)
    v_out_ref[...] = jnp.where(spike, Vreset, V_new)


def _adexlif_scan_kernel(x_ref, v_ref, w_ref, lin_ref,
                         spk_ref, v_out_ref, w_out_ref,
                         v_acc, w_acc, *,
                         dt_over_taum, dt_over_tauw, inv_delta_T,
                         Vr, Vth, Vreset, Vrh, delta_T, a, b, R):
    """Fused time loop: V/W stay resident in VMEM scratch across the time grid axis."""
    t = pl.program_id(2)

    @pl.when(t == 0)
    def _():
        v_acc[...] = v_ref[...]
        w_acc[...] = w_ref[...]

    x = x_ref[0]                                            # (tile_r, tile_c) slab for step t
    V = v_acc[...]
    W = w_acc[...]
    lin = lin_ref[...]

    I = lin * x
    v_minus_vr = V - Vr
    exp_term = delta_T * jnp.exp((V - Vrh) * inv_delta_T)
    V_new = V + dt_over_taum * (exp_term - v_minus_vr + R * (I - W))
    W_new = W + dt_over_tauw * (a * v_minus_vr - W)

    spike = V_new - Vth >= 0.0
    spk_ref[0] = jnp.where(spike, 1.0, 0.0).astype(spk_ref.dtype)
    w_acc[...] = jnp.where(spike, W_new + b, W_new)
    v_acc[...] = jnp.where(spike, Vreset, V_new)

    @pl.when(t == pl.num_programs(2) - 1)
    def _():
        v_out_ref[...] = v_acc[...]
        w_out_ref[...] = w_acc[...]


# ----------------------------------------------------------------------------- tiling
def _round_up(n, m):
    return ((n + m - 1) // m) * m


def _vmem_capacity_bytes():
    try:
        return int(pltpu.get_tpu_info().vmem_capacity_bytes)
    except Exception:
        return 64 * 1024 * 1024            # conservative fallback (v7x per-core physical)


def _best_tile(padded_dim, unit, cap):
    """Largest unit-aligned tile <= cap that minimizes extra padding of padded_dim."""
    cap = max(unit, (cap // unit) * unit)
    if padded_dim <= cap:
        return padded_dim
    best_t, best_key = unit, None
    for t in range(cap, unit - 1, -unit):
        pad = (-padded_dim) % t
        key = (pad, -t)
        if best_key is None or key < best_key:
            best_key, best_t = key, t
        if pad == 0:                       # largest zero-padding tile found
            break
    return best_t


def _tiling(rows, cols):
    """Lane-dense tiles + padded extents sized for this chip's VMEM."""
    rows0 = _round_up(max(rows, 1), _SUBLANE)
    cols0 = _round_up(max(cols, 1), _LANE)

    vmem_limit = min(int(_vmem_capacity_bytes() * 0.7), 96 * 1024 * 1024)
    # ~50 B of VMEM per tile element: double-buffered x/V/W in + V/W/spk out, plus
    # the f32 V/W state scratch used by the fused time-loop kernel.
    max_tile_elems = max(_SUBLANE * _LANE, min(512 * 1024, (vmem_limit // 2) // 50))

    tile_c_cap = min(2048, max(_LANE, (max_tile_elems // _SUBLANE) // _LANE * _LANE))
    tile_c = _best_tile(cols0, _LANE, tile_c_cap)
    tile_r_cap = min(512, max(_SUBLANE, (max_tile_elems // tile_c) // _SUBLANE * _SUBLANE))
    tile_r = _best_tile(rows0, _SUBLANE, tile_r_cap)

    rows_p = _round_up(rows0, tile_r)
    cols_p = _round_up(cols0, tile_c)
    grid_r, grid_c = rows_p // tile_r, cols_p // tile_c

    # v7x has 2 TensorCores: make sure there are >= 2 parallel blocks when possible.
    if grid_r * grid_c == 1 and rows0 >= 2 * _SUBLANE:
        tile_r = max(_SUBLANE, (rows0 // 2) // _SUBLANE * _SUBLANE)
        rows_p = _round_up(rows0, tile_r)
        grid_r = rows_p // tile_r

    return tile_r, tile_c, rows_p, cols_p, grid_r, grid_c, vmem_limit


# ----------------------------------------------------------------------------- wrappers
def _flatten_pad(a4, rows_p, cols_p, fill):
    B, n_out, params_n, channels = a4.shape
    a2 = a4.reshape(B * n_out, params_n * channels).astype(jnp.float32)
    return jnp.pad(a2, ((0, rows_p - a2.shape[0]), (0, cols_p - a2.shape[1])),
                   constant_values=fill)


def _linear_row(linear, params_n, channels, cols_p):
    # linear[0, c] scales channel c of every (params_n, channels) slab (right-aligned
    # PyTorch broadcasting) -> tile it across params_n and pad to the lane-dense width.
    lin = jnp.broadcast_to(jnp.asarray(linear, jnp.float32).reshape(1, 1, -1),
                           (1, params_n, channels)).reshape(1, params_n * channels)
    return jnp.pad(lin, ((0, 0), (0, cols_p - lin.shape[1])))


def _fold_params(dt, taum, tauw, delta_T, Vr, Vth, Vreset, Vrh, a, b, R):
    dt_ms = dt * 1000.0                                     # matches `self.dt = dt * 1000`
    return dict(dt_over_taum=dt_ms / taum, dt_over_tauw=dt_ms / tauw,
                inv_delta_T=1.0 / delta_T, Vr=Vr, Vth=Vth, Vreset=Vreset,
                Vrh=Vrh, delta_T=delta_T, a=a, b=b, R=R)


def _check_broadcast(n_out, channels):
    if not (n_out == channels or n_out == 1):
        raise ValueError("linear (1, n_out) must right-align broadcast onto channels "
                         "(PyTorch broadcasting): need n_out == channels or n_out == 1.")


def adexlif_step(x, V, W, linear, *,
                 dt=1.0, Vr=-70.0, Vth=-30.0, Vrh=-50.0, Vreset=-51.0,
                 delta_T=2.0, a=0.5, b=7.0, R=0.5, taum=50.0, tauw=1000.0,
                 spike_dtype=jnp.bfloat16):
    """One AdexLIF.forward step. Returns (spk, (V_new, W_new, spk)) with 4-D shapes."""
    B, n_out, params_n, channels = x.shape
    _check_broadcast(n_out, channels)

    rows, cols = B * n_out, params_n * channels
    tile_r, tile_c, rows_p, cols_p, grid_r, grid_c, vmem_limit = _tiling(rows, cols)

    x2 = _flatten_pad(x, rows_p, cols_p, 0.0)
    V2 = _flatten_pad(V, rows_p, cols_p, Vr)                # padded neurons stay benign
    W2 = _flatten_pad(W, rows_p, cols_p, 0.0)
    lin_row = _linear_row(linear, params_n, channels, cols_p)

    kernel = functools.partial(
        _adexlif_step_kernel,
        **_fold_params(dt, taum, tauw, delta_T, Vr, Vth, Vreset, Vrh, a, b, R))

    tile_spec = pl.BlockSpec((tile_r, tile_c), lambda i, j: (i, j))
    lin_spec = pl.BlockSpec((1, tile_c), lambda i, j: (0, j))   # resident gain row
    f32_out = jax.ShapeDtypeStruct((rows_p, cols_p), jnp.float32)
    spk_out = jax.ShapeDtypeStruct((rows_p, cols_p), spike_dtype)

    n = rows_p * cols_p
    cost = pl.CostEstimate(
        flops=18 * n, transcendentals=n,
        bytes_accessed=(3 * 4 + 2 * 4 + jnp.dtype(spike_dtype).itemsize) * n)

    spk2, V2n, W2n = pl.pallas_call(
        kernel,
        out_shape=(spk_out, f32_out, f32_out),
        grid_spec=pltpu.PrefetchScalarGridSpec(
            num_scalar_prefetch=0,
            grid=(grid_r, grid_c),
            in_specs=[tile_spec, tile_spec, tile_spec, lin_spec],
            out_specs=[tile_spec, tile_spec, tile_spec],
        ),
        input_output_aliases={1: 1, 2: 2},   # V, W in place (donate V/W for zero-copy)
        compiler_params=pltpu.CompilerParams(
            dimension_semantics=("parallel", "parallel"),
            vmem_limit_bytes=vmem_limit),
        cost_estimate=cost,
    )(x2, V2, W2, lin_row)

    shape4 = (B, n_out, params_n, channels)
    spk = spk2[:rows, :cols].reshape(shape4)
    V_new = V2n[:rows, :cols].reshape(shape4)
    W_new = W2n[:rows, :cols].reshape(shape4)
    return spk, (V_new, W_new, spk)


def adexlif_simulate(x_seq, V, W, linear, *,
                     dt=1.0, Vr=-70.0, Vth=-30.0, Vrh=-50.0, Vreset=-51.0,
                     delta_T=2.0, a=0.5, b=7.0, R=0.5, taum=50.0, tauw=1000.0,
                     spike_dtype=jnp.bfloat16):
    """Run T AdexLIF steps in ONE kernel; V/W stay resident in VMEM across the time loop.

    x_seq: (T, B, n_out, params_n, channels). Returns (spk_seq, (V_T, W_T))."""
    T, B, n_out, params_n, channels = x_seq.shape
    _check_broadcast(n_out, channels)

    rows, cols = B * n_out, params_n * channels
    tile_r, tile_c, rows_p, cols_p, grid_r, grid_c, vmem_limit = _tiling(rows, cols)

    x3 = x_seq.reshape(T, rows, cols).astype(jnp.float32)
    x3 = jnp.pad(x3, ((0, 0), (0, rows_p - rows), (0, cols_p - cols)))
    V2 = _flatten_pad(V, rows_p, cols_p, Vr)
    W2 = _flatten_pad(W, rows_p, cols_p, 0.0)
    lin_row = _linear_row(linear, params_n, channels, cols_p)

    kernel = functools.partial(
        _adexlif_scan_kernel,
        **_fold_params(dt, taum, tauw, delta_T, Vr, Vth, Vreset, Vrh, a, b, R))

    state_spec = pl.BlockSpec((tile_r, tile_c), lambda i, j, t: (i, j))
    seq_spec = pl.BlockSpec((1, tile_r, tile_c), lambda i, j, t: (t, i, j))
    lin_spec = pl.BlockSpec((1, tile_c), lambda i, j, t: (0, j))

    f32_state = jax.ShapeDtypeStruct((rows_p, cols_p), jnp.float32)
    spk_out = jax.ShapeDtypeStruct((T, rows_p, cols_p), spike_dtype)

    n = rows_p * cols_p
    spk_bytes = jnp.dtype(spike_dtype).itemsize
    cost = pl.CostEstimate(
        flops=18 * n * T, transcendentals=n * T,
        bytes_accessed=(4 + spk_bytes) * n * T + 4 * 4 * n)

    spk3, V2n, W2n = pl.pallas_call(
        kernel,
        out_shape=(spk_out, f32_state, f32_state),
        grid_spec=pltpu.PrefetchScalarGridSpec(
            num_scalar_prefetch=0,
            grid=(grid_r, grid_c, T),
            in_specs=[seq_spec, state_spec, state_spec, lin_spec],
            out_specs=[seq_spec, state_spec, state_spec],
            scratch_shapes=[pltpu.VMEM((tile_r, tile_c), jnp.float32),
                            pltpu.VMEM((tile_r, tile_c), jnp.float32)],
        ),
        input_output_aliases={1: 1, 2: 2},
        compiler_params=pltpu.CompilerParams(
            dimension_semantics=("parallel", "parallel", "arbitrary"),
            vmem_limit_bytes=vmem_limit),
        cost_estimate=cost,
    )(x3, V2, W2, lin_row)

    shape4 = (B, n_out, params_n, channels)
    spk_seq = spk3[:, :rows, :cols].reshape((T,) + shape4)
    V_new = V2n[:rows, :cols].reshape(shape4)
    W_new = W2n[:rows, :cols].reshape(shape4)
    return spk_seq, (V_new, W_new)


def init_state(batch, n_out, params_n, channels, Vr=-70.0):
    """Initial AdexLIFstate when self.state is None."""
    V = jnp.full((batch, n_out, params_n, channels), Vr, dtype=jnp.float32)
    W = jnp.zeros((batch, n_out, params_n, channels), dtype=jnp.float32)
    S = jnp.zeros((batch, n_out, params_n, channels), dtype=jnp.float32)
    return V, W, S


# ----------------------------------------------------------------------------- demo
if __name__ == "__main__":
    # channels == n_out so that linear (1, n_out) broadcasts exactly as in PyTorch.
    batch, n_out, params_n, channels = 2, 4, 8, 4
    T = 6

    key = jax.random.PRNGKey(0)
    kx, kxs, kl = jax.random.split(key, 3)
    x = jax.random.uniform(kx, (batch, n_out, params_n, channels),
                           dtype=jnp.float32, minval=0.0, maxval=10.0)
    x_seq = jax.random.uniform(kxs, (T, batch, n_out, params_n, channels),
                               dtype=jnp.float32, minval=0.0, maxval=10.0)
    linear = (jnp.ones((1, n_out), jnp.float32)
              + 0.1 * jax.random.normal(kl, (1, n_out), dtype=jnp.float32))
    V0, W0, _ = init_state(batch, n_out, params_n, channels)

    def ref_step(x, V, W, linear, dt=1.0, Vr=-70.0, Vth=-30.0, Vrh=-50.0,
                 Vreset=-51.0, delta_T=2.0, a=0.5, b=7.0, R=0.5,
                 taum=50.0, tauw=1000.0):
        dt = dt * 1000.0
        I = linear * x
        dV = (-(V - Vr) + delta_T * jnp.exp((V - Vrh) / delta_T) + R * (I - W)) / taum
        dW = (a * (V - Vr) - W) / tauw
        V = V + dt * dV
        W = W + dt * dW
        spk = (V - Vth >= 0).astype(jnp.float32)
        W = (1 - spk) * W + spk * (W + b)
        V = (1 - spk) * V + spk * Vreset
        return spk, V, W

    # ---- single step vs reference ----
    ref_spk, ref_V, ref_W = ref_step(x, V0, W0, linear)
    spk, (V1, W1, _) = adexlif_step(x, V0, W0, linear)
    jax.block_until_ready((spk, V1, W1))

    assert spk.shape == (batch, n_out, params_n, channels)
    assert jnp.array_equal(spk.astype(jnp.float32), ref_spk)
    assert jnp.allclose(V1, ref_V, atol=1e-3, rtol=1e-5)
    assert jnp.allclose(W1, ref_W, atol=1e-3, rtol=1e-5)

    # ---- fused multi-step (time loop inside the kernel) vs reference scan ----
    rV, rW = V0, W0
    ref_spks = []
    for t in range(T):
        s, rV, rW = ref_step(x_seq[t], rV, rW, linear)
        ref_spks.append(s)
    ref_spk_seq = jnp.stack(ref_spks)

    spk_seq, (VT, WT) = adexlif_simulate(x_seq, V0, W0, linear)
    jax.block_until_ready((spk_seq, VT, WT))

    assert spk_seq.shape == (T, batch, n_out, params_n, channels)
    assert jnp.array_equal(spk_seq.astype(jnp.float32), ref_spk_seq)
    assert jnp.allclose(VT, rV, atol=1e-2, rtol=1e-4)
    assert jnp.allclose(WT, rW, atol=1e-2, rtol=1e-4)

    print("KERNEL_OK")
</pallas_src>

<mosaic_0001>
module attributes {stable_mosaic.version = 11 : i64} {
  func.func @_adexlif_step_kernel(%arg0: i32, %arg1: i32, %arg2: memref<8x128xf32, #tpu.memory_space<vmem>>, %arg3: memref<8x128xf32, #tpu.memory_space<vmem>>, %arg4: memref<8x128xf32, #tpu.memory_space<vmem>>, %arg5: memref<1x128xf32, #tpu.memory_space<vmem>>, %arg6: memref<8x128xbf16, #tpu.memory_space<vmem>>, %arg7: memref<8x128xf32, #tpu.memory_space<vmem>>, %arg8: memref<8x128xf32, #tpu.memory_space<vmem>>) attributes {dimension_semantics = [#tpu.dimension_semantics<parallel>, #tpu.dimension_semantics<parallel>], iteration_bounds = array<i64: 1, 1>, scalar_prefetch = 0 : i64, scratch_operands = 0 : i64, tpu.core_type = #tpu.core_type<tc>, window_params = [{transform_indices = @transform_0, window_bounds = array<i64: 8, 128>}, {transform_indices = @transform_1, window_bounds = array<i64: 8, 128>}, {transform_indices = @transform_2, window_bounds = array<i64: 8, 128>}, {transform_indices = @transform_3, window_bounds = array<i64: 1, 128>}, {transform_indices = @transform_4, window_bounds = array<i64: 8, 128>}, {transform_indices = @transform_5, window_bounds = array<i64: 8, 128>}, {transform_indices = @transform_6, window_bounds = array<i64: 8, 128>}]} {
    %c0 = arith.constant 0 : index
    %c0_0 = arith.constant 0 : index
    %0 = vector.load %arg2[%c0, %c0_0] : memref<8x128xf32, #tpu.memory_space<vmem>>, vector<8x128xf32>
    %c0_1 = arith.constant 0 : index
    %c0_2 = arith.constant 0 : index
    %1 = vector.load %arg3[%c0_1, %c0_2] : memref<8x128xf32, #tpu.memory_space<vmem>>, vector<8x128xf32>
    %c0_3 = arith.constant 0 : index
    %c0_4 = arith.constant 0 : index
    %2 = vector.load %arg4[%c0_3, %c0_4] : memref<8x128xf32, #tpu.memory_space<vmem>>, vector<8x128xf32>
    %c0_5 = arith.constant 0 : index
    %c0_6 = arith.constant 0 : index
    %3 = vector.load %arg5[%c0_5, %c0_6] : memref<1x128xf32, #tpu.memory_space<vmem>>, vector<1x128xf32>
    %4 = vector.broadcast %3 : vector<1x128xf32> to vector<8x128xf32>
    %5 = arith.mulf %4, %0 : vector<8x128xf32>
    %cst = arith.constant -7.000000e+01 : f32
    %6 = vector.broadcast %cst : f32 to vector<8x128xf32>
    %7 = arith.subf %1, %6 : vector<8x128xf32>
    %cst_7 = arith.constant -5.000000e+01 : f32
    %8 = vector.broadcast %cst_7 : f32 to vector<8x128xf32>
    %9 = arith.subf %1, %8 : vector<8x128xf32>
    %cst_8 = arith.constant 5.000000e-01 : f32
    %10 = vector.broadcast %cst_8 : f32 to vector<8x128xf32>
    %11 = arith.mulf %9, %10 : vector<8x128xf32>
    %12 = math.exp %11 : vector<8x128xf32>
    %cst_9 = arith.constant 2.000000e+00 : f32
    %13 = vector.broadcast %cst_9 : f32 to vector<8x128xf32>
    %14 = arith.mulf %13, %12 : vector<8x128xf32>
    %15 = arith.subf %14, %7 : vector<8x128xf32>
    %16 = arith.subf %5, %2 : vector<8x128xf32>
    %cst_10 = arith.constant 5.000000e-01 : f32
    %17 = vector.broadcast %cst_10 : f32 to vector<8x128xf32>
    %18 = arith.mulf %17, %16 : vector<8x128xf32>
    %19 = arith.addf %15, %18 : vector<8x128xf32>
    %cst_11 = arith.constant 2.000000e+01 : f32
    %20 = vector.broadcast %cst_11 : f32 to vector<8x128xf32>
    %21 = arith.mulf %20, %19 : vector<8x128xf32>
    %22 = arith.addf %1, %21 : vector<8x128xf32>
    %cst_12 = arith.constant 5.000000e-01 : f32
    %23 = vector.broadcast %cst_12 : f32 to vector<8x128xf32>
    %24 = arith.mulf %23, %7 : vector<8x128xf32>
    %25 = arith.subf %24, %2 : vector<8x128xf32>
    %cst_13 = arith.constant 1.000000e+00 : f32
    %26 = vector.broadcast %cst_13 : f32 to vector<8x128xf32>
    %27 = arith.mulf %26, %25 : vector<8x128xf32>
    %28 = arith.addf %2, %27 : vector<8x128xf32>
    %cst_14 = arith.constant -3.000000e+01 : f32
    %29 = vector.broadcast %cst_14 : f32 to vector<8x128xf32>
    %30 = arith.subf %22, %29 : vector<8x128xf32>
    %cst_15 = arith.constant 0.000000e+00 : f32
    %31 = vector.broadcast %cst_15 : f32 to vector<8x128xf32>
    %32 = arith.cmpf oge, %30, %31 : vector<8x128xf32>
    %cst_16 = arith.constant 1.000000e+00 : f32
    %cst_17 = arith.constant 0.000000e+00 : f32
    %33 = vector.broadcast %cst_16 : f32 to vector<8x128xf32>
    %34 = vector.broadcast %cst_17 : f32 to vector<8x128xf32>
    %35 = arith.select %32, %33, %34 : vector<8x128xi1>, vector<8x128xf32>
    %36 = arith.truncf %35 : vector<8x128xf32> to vector<8x128xbf16>
    %c0_18 = arith.constant 0 : index
    %c0_19 = arith.constant 0 : index
    %37 = vector.load %arg6[%c0_18, %c0_19] : memref<8x128xbf16, #tpu.memory_space<vmem>>, vector<8x128xbf16>
    tpu.vector_store %arg6[%c0_18, %c0_19], %36 {strides = array<i32>} : memref<8x128xbf16, #tpu.memory_space<vmem>>, vector<8x128xbf16>,
    %cst_20 = arith.constant 7.000000e+00 : f32
    %38 = vector.broadcast %cst_20 : f32 to vector<8x128xf32>
    %39 = arith.addf %28, %38 : vector<8x128xf32>
    %40 = arith.select %32, %39, %28 : vector<8x128xi1>, vector<8x128xf32>
    %c0_21 = arith.constant 0 : index
    %c0_22 = arith.constant 0 : index
    %41 = vector.load %arg8[%c0_21, %c0_22] : memref<8x128xf32, #tpu.memory_space<vmem>>, vector<8x128xf32>
    tpu.vector_store %arg8[%c0_21, %c0_22], %40 {strides = array<i32>} : memref<8x128xf32, #tpu.memory_space<vmem>>, vector<8x128xf32>,
    %cst_23 = arith.constant -5.100000e+01 : f32
    %42 = vector.broadcast %cst_23 : f32 to vector<8x128xf32>
    %43 = arith.select %32, %42, %22 : vector<8x128xi1>, vector<8x128xf32>
    %c0_24 = arith.constant 0 : index
    %c0_25 = arith.constant 0 : index
    %44 = vector.load %arg7[%c0_24, %c0_25] : memref<8x128xf32, #tpu.memory_space<vmem>>, vector<8x128xf32>
    tpu.vector_store %arg7[%c0_24, %c0_25], %43 {strides = array<i32>} : memref<8x128xf32, #tpu.memory_space<vmem>>, vector<8x128xf32>,
    return
  }
  func.func @transform_0(%arg0: i32, %arg1: i32) -> (i32, i32) {
    %c0_i32 = arith.constant 0 : i32
    return %arg0, %arg1 : i32, i32
  }
  func.func @transform_1(%arg0: i32, %arg1: i32) -> (i32, i32) {
    %c0_i32 = arith.constant 0 : i32
    return %arg0, %arg1 : i32, i32
  }
  func.func @transform_2(%arg0: i32, %arg1: i32) -> (i32, i32) {
    %c0_i32 = arith.constant 0 : i32
    return %arg0, %arg1 : i32, i32
  }
  func.func @transform_3(%arg0: i32, %arg1: i32) -> (i32, i32) {
    %c0_i32 = arith.constant 0 : i32
    %c0_i32_0 = arith.constant 0 : i32
    return %c0_i32, %arg1 : i32, i32
  }
  func.func @transform_4(%arg0: i32, %arg1: i32) -> (i32, i32) {
    %c0_i32 = arith.constant 0 : i32
    return %arg0, %arg1 : i32, i32
  }
  func.func @transform_5(%arg0: i32, %arg1: i32) -> (i32, i32) {
    %c0_i32 = arith.constant 0 : i32
    return %arg0, %arg1 : i32, i32
  }
  func.func @transform_6(%arg0: i32, %arg1: i32) -> (i32, i32) {
    %c0_i32 = arith.constant 0 : i32
    return %arg0, %arg1 : i32, i32
  }
}

</mosaic_0001>

<llo_original>
// kernel: tpu_custom_call.1
$region0: #{tpu_custom_call.1}
  #allocation0 [shape = 'u32[]', space=smem, size = 0x4, offset = 0x4, fixed_abs, tag = 'smem constant byte address 0x4 - core index']
  #allocation1 [shape = 'u32[144,128]{1,0:T(1,128)}', space=vmem, size = 0x12000, scoped, tag = 'internal scratch']
  %s0 = inlined_call_operand.vmem [shape: f32[8,128], index: 0, kind: input, shape index: {}]
  %s1 = inlined_call_operand.hbm [shape: f32[8,128], index: 1, kind: input, shape index: {}, may-alias: {1,5}]
  %s2 = inlined_call_operand.hbm [shape: f32[8,128], index: 2, kind: input, shape index: {}, may-alias: {2,6}]
  %s3 = inlined_call_operand.vmem [shape: f32[1,128], index: 3, kind: input, shape index: {}]
  %s4 = inlined_call_operand.hbm [shape: bf16[8,128], index: 4, kind: output, shape index: {0}]
  %s5 = inlined_call_operand.hbm [shape: f32[8,128], index: 5, kind: output, shape index: {1}, may-alias: {1,5}]
  %s6 = inlined_call_operand.hbm [shape: f32[8,128], index: 6, kind: output, shape index: {2}, may-alias: {2,6}]
  %7 = xla_tuple %s4, %s5, %s6
  %s8 = sld [smem:[#allocation0]]
  $region50: #{tpu_custom_call.1} parent=0
    _
  %s10 = ssub.s32 1, %s8
  %s11 = scalar_select 0, %s10, %s8
  $region1: #{tpu_custom_call.1} parent=0
    #allocation2 [shape = 'u8[4096]{0}', space=vmem, size = 0x1000, scoped, tag = 'input window, operand 1, single buffered']
    #allocation3 [shape = 's32[1]{0}', space=sflag, size = 0x4, scoped, tag = 'scoped memory for tpu_custom_call.1']
    #allocation4 [shape = 's32[1]{0}', space=sflag, size = 0x4, scoped, tag = 'scoped memory for tpu_custom_call.1']
    #allocation5 [shape = 'u8[4096]{0}', space=vmem, size = 0x1000, scoped, tag = 'input window, operand 2, single buffered']
    #allocation6 [shape = 's32[1]{0}', space=sflag, size = 0x4, scoped, tag = 'scoped memory for tpu_custom_call.1']
    #allocation7 [shape = 'u8[2048]{0}', space=vmem, size = 0x800, scoped, tag = 'output window, operand 0, single buffered']
    #allocation8 [shape = 'u8[4096]{0}', space=vmem, size = 0x1000, scoped, tag = 'output window, operand 1, single buffered']
    #allocation9 [shape = 's32[1]{0}', space=sflag, size = 0x4, scoped, tag = 'scoped memory for tpu_custom_call.1']
    #allocation10 [shape = 'u8[4096]{0}', space=vmem, size = 0x1000, scoped, tag = 'output window, operand 2, single buffered']
    %12 = vsyncpa [#allocation3], 0
    %13 = vsyncpa [#allocation6], 0
    %14 = vsyncpa [#allocation4], 0
    %15 = vsyncpa [#allocation9], 0
    // Predicated region
    $region2: #{tpu_custom_call.1} parent=1 // pred_check
      _
    $region3: #{tpu_custom_call.1} parent=1 // pred_check_branch
      %17 = sbr.rel (0) target = $region5
    $region4: #{tpu_custom_call.1} parent=1 // pred_region
      _
    $region5: #{tpu_custom_call.1} parent=1 // pred_fallthru
      _
    // Predicated region
    $region6: #{tpu_custom_call.1} parent=1 // pred_check
      _
    $region7: #{tpu_custom_call.1} parent=1 // pred_check_branch
      %19 = sbr.rel (0) target = $region9
    $region8: #{tpu_custom_call.1} parent=1 // pred_region
      %s21 = ssub.s32 128, 128
      %22 = vsyncadd [#allocation3], %s21
      %s24 = sshll.u32 [#allocation2], 4
      %s25 = int_to_ptr.vmem [resolvable:$true] %s24
      %27 = dma.hbm_to_vmem [thread:$0]  %s1, 128, %s25, [#allocation3]
    $region9: #{tpu_custom_call.1} parent=1 // pred_fallthru
      _
    // Predicated region
    $region10: #{tpu_custom_call.1} parent=1 // pred_check
      _
    $region11: #{tpu_custom_call.1} parent=1 // pred_check_branch
      %29 = sbr.rel (0) target = $region13
    $region12: #{tpu_custom_call.1} parent=1 // pred_region
      %s31 = ssub.s32 128, 128
      %32 = vsyncadd [#allocation6], %s31
      %s34 = sshll.u32 [#allocation5], 4
      %s35 = int_to_ptr.vmem [resolvable:$true] %s34
      %37 = dma.hbm_to_vmem [thread:$0]  %s2, 128, %s35, [#allocation6]
    $region13: #{tpu_custom_call.1} parent=1 // pred_fallthru
      _
    // Predicated region
    $region14: #{tpu_custom_call.1} parent=1 // pred_check
      _
    $region15: #{tpu_custom_call.1} parent=1 // pred_check_branch
      %39 = sbr.rel (0) target = $region17
    $region16: #{tpu_custom_call.1} parent=1 // pred_region
      _
    $region17: #{tpu_custom_call.1} parent=1 // pred_fallthru
      _
    // Predicated region
    $region18: #{tpu_custom_call.1} parent=1 // pred_check
      _
    $region19: #{tpu_custom_call.1} parent=1 // pred_check_branch
      %41 = sbr.rel (0) target = $region21
    $region20: #{tpu_custom_call.1} parent=1 // pred_region
      %42 = dma.done [#allocation3], 128
    $region21: #{tpu_custom_call.1} parent=1 // pred_fallthru
      _
    // Predicated region
    $region22: #{tpu_custom_call.1} parent=1 // pred_check
      _
    $region23: #{tpu_custom_call.1} parent=1 // pred_check_branch
      %44 = sbr.rel (0) target = $region25
    $region24: #{tpu_custom_call.1} parent=1 // pred_region
      %45 = dma.done [#allocation6], 128
    $region25: #{tpu_custom_call.1} parent=1 // pred_fallthru
      _
    %v46 = vld [vmem:[%s0] sm:$0xff]
    %v47 = vld [vmem:[#allocation2] sm:$0xff]
    %v48 = vld [vmem:[#allocation5] sm:$0xff]
    %v49 = vld [vmem:[%s3] sm:$0x1]
    %v51 = vlaneseq
    %v52 = vshrl.u32 %v51, 7
    %v53 = vsub.s32 0, %v52
    %v54 = vrot.slane %v49, %v53
    %v56 = vmul.f32 %v54, %v46
    %v57 = vsub.f32 %v47, -70.0
    %v58 = vsub.f32 %v47, -50.0
    %v59 = vmul.f32 %v58, 0.5
    %v60 = vmul.f32 %v59, 1.442695
    %v61 = vpow.pop %v60
    %v62 = vmul.f32 %v61, 2.0
    %v63 = vsub.f32 %v62, %v57
    %v64 = vsub.f32 %v56, %v48
    %v65 = vmul.f32 %v64, 0.5
    %v66 = vadd.f32 %v63, %v65
    %v67 = vmul.f32 %v66, 20.0
    %v68 = vadd.f32 %v47, %v67
    %v69 = vmul.f32 %v57, 0.5
    %v70 = vsub.f32 %v69, %v48
    %v71 = vadd.f32 %v48, %v70
    %v72 = vsub.f32 %v68, -30.0
    %vm73 = vcmp.ge.f32.partialorder %v72, 0.0
    %v74 = vsel %vm73, 1.0, 0.0
    %v75 = vpack.c.bf16 %v74, %v74
    %76 = vst [vmem:[#allocation7] sm:$0xf] %v75
    %v77 = vadd.f32 %v71, 7.0
    %v78 = vsel %vm73, %v77, %v71
    %79 = vst [vmem:[#allocation10] sm:$0xff] %v78
    %v80 = vsel %vm73, -51.0, %v68
    %81 = vst [vmem:[#allocation8] sm:$0xff] %v80
    // Predicated region
    $region26: #{tpu_custom_call.1} parent=1 // pred_check
      _
    $region27: #{tpu_custom_call.1} parent=1 // pred_check_branch
      %83 = sbr.rel (0) target = $region29
    $region28: #{tpu_custom_call.1} parent=1 // pred_region
      %s85 = ssub.s32 64, 64
      %86 = vsyncadd [#allocation4], %s85
      %s88 = sshll.u32 [#allocation7], 4
      %s89 = int_to_ptr.vmem [resolvable:$true] %s88
      %91 = dma.vmem_to_hbm [thread:$0]  %s89, 64, %s4, [#allocation4]
    $region29: #{tpu_custom_call.1} parent=1 // pred_fallthru
      _
    // Predicated region
    $region30: #{tpu_custom_call.1} parent=1 // pred_check
      _
    $region31: #{tpu_custom_call.1} parent=1 // pred_check_branch
      %93 = sbr.rel (0) target = $region33
    $region32: #{tpu_custom_call.1} parent=1 // pred_region
      %s95 = ssub.s32 128, 128
      %96 = vsyncadd [#allocation9], %s95
      %s98 = sshll.u32 [#allocation8], 4
      %s99 = int_to_ptr.vmem [resolvable:$true] %s98
      %101 = dma.vmem_to_hbm [thread:$0]  %s99, 128, %s5, [#allocation9]
    $region33: #{tpu_custom_call.1} parent=1 // pred_fallthru
      _
    // Predicated region
    $region34: #{tpu_custom_call.1} parent=1 // pred_check
      _
    $region35: #{tpu_custom_call.1} parent=1 // pred_check_branch
      %103 = sbr.rel (0) target = $region37
    $region36: #{tpu_custom_call.1} parent=1 // pred_region
      %s105 = ssub.s32 128, 128
      %106 = vsyncadd [#allocation9], %s105
      %s108 = sshll.u32 [#allocation10], 4
      %s109 = int_to_ptr.vmem [resolvable:$true] %s108
      %111 = dma.vmem_to_hbm [thread:$0]  %s109, 128, %s6, [#allocation9]
    $region37: #{tpu_custom_call.1} parent=1 // pred_fallthru
      _
    // Predicated region
    $region38: #{tpu_custom_call.1} parent=1 // pred_check
      _
    $region39: #{tpu_custom_call.1} parent=1 // pred_check_branch
      %113 = sbr.rel (0) target = $region41
    $region40: #{tpu_custom_call.1} parent=1 // pred_region
      %114 = dma.done [#allocation4], 64
    $region41: #{tpu_custom_call.1} parent=1 // pred_fallthru
      _
    // Predicated region
    $region42: #{tpu_custom_call.1} parent=1 // pred_check
      _
    $region43: #{tpu_custom_call.1} parent=1 // pred_check_branch
      %116 = sbr.rel (0) target = $region45
    $region44: #{tpu_custom_call.1} parent=1 // pred_region
      %117 = dma.done [#allocation9], 128
    $region45: #{tpu_custom_call.1} parent=1 // pred_fallthru
      _
    // Predicated region
    $region46: #{tpu_custom_call.1} parent=1 // pred_check
      _
    $region47: #{tpu_custom_call.1} parent=1 // pred_check_branch
      %119 = sbr.rel (0) target = $region49
    $region48: #{tpu_custom_call.1} parent=1 // pred_region
      %120 = dma.done [#allocation9], 128
    $region49: #{tpu_custom_call.1} parent=1 // pred_fallthru
      _
    %121 = vsyncpa [#allocation3], 1
    %122 = vsyncpa [#allocation6], 1
    %123 = vsyncpa [#allocation4], 1
    %124 = vsyncpa [#allocation9], 1

</llo_original>
